<compile_context>
chip_gen: v5e
topology: v5e:2x2
jax: 0.10.0
libtpu: 0.0.40
codegen_flags: <defaults>
</compile_context>

<pallas_src>
import functools

import jax
import jax.numpy as jnp
from jax.experimental import pallas as pl
from jax.experimental.pallas import tpu as pltpu


def _norm_kernel(x_ref, alpha_ref, bias_ref, o_ref, *, hidden, eps):
    # x_ref: (tile_rows, hidden); alpha_ref / bias_ref: (1, hidden).
    # All arithmetic in f32 (mandatory on v5e's VPU/EUP, harmless elsewhere).
    x = x_ref[...].astype(jnp.float32)
    mean = jnp.mean(x, axis=-1, keepdims=True)
    diff = x - mean
    # torch.Tensor.std defaults to the unbiased estimator (ddof = 1).
    # Divide in-kernel so hidden == 1 gives inf/nan (torch parity) rather than
    # a host-side ZeroDivisionError at trace time.
    var = jnp.sum(diff * diff, axis=-1, keepdims=True) / jnp.float32(hidden - 1)
    std = jnp.sqrt(var)
    # Reciprocal on the EUP slot instead of a VALU divide sequence; approx=False
    # keeps exact parity with the torch reference at 1e-5 tolerance.
    inv = pl.reciprocal(std - jnp.float32(eps), approx=False)
    alpha = alpha_ref[...].astype(jnp.float32)
    bias = bias_ref[...].astype(jnp.float32)
    o_ref[...] = ((alpha * diff) * inv + bias).astype(o_ref.dtype)


def _sublane_multiple(dtype) -> int:
    """Minimum second-to-last tile multiple for this dtype (sublane packing)."""
    itemsize = jnp.dtype(dtype).itemsize
    if itemsize >= 4:
        return 8
    if itemsize == 2:
        return 16
    return 32


def _round_up(x: int, m: int) -> int:
    return ((x + m - 1) // m) * m


def _cdiv(a: int, b: int) -> int:
    return (a + b - 1) // b


def _vmem_capacity_bytes() -> int:
    """Per-core VMEM capacity; conservative fallback if the query is unavailable."""
    try:
        cap = getattr(pltpu.get_tpu_info(), "vmem_capacity_bytes", None)
        if cap:
            return int(cap)
    except Exception:
        pass
    return 64 * 1024 * 1024  # v7x per-TensorCore VMEM (smallest current gen)


def _pick_tile_rows(rows: int, hidden: int, dtype, vmem_budget_bytes: int) -> int:
    """Row tile sized from a ~4 MiB block-byte target.

    Keeps the grid at >= ~8 steps when rows allow (pipeline steady state,
    >= 4 steps per TC on v7x) and nudges the step count to be even so the two
    v7x TensorCores stay balanced.  512-1024 row tiles already sit at ~85-86%
    of HBM roofline, so bigger tiles only cost pipeline startup/drain.
    """
    sub = _sublane_multiple(dtype)
    itemsize = jnp.dtype(dtype).itemsize
    bytes_per_row = hidden * itemsize

    # ~4 MiB input block (output block is the same size).
    target_block_bytes = 4 * 1024 * 1024
    tile = max(sub, (target_block_bytes // max(bytes_per_row, 1)) // sub * sub)
    tile = min(tile, 1024)

    # Hard VMEM safety cap: double-buffered input + output blocks must fit the
    # budget (real footprint only -- compute temporaries live in vregs).
    per_row_vmem = bytes_per_row * 4  # 2x in + 2x out buffers
    vmem_cap_rows = max(sub, (vmem_budget_bytes // max(per_row_vmem, 1)) // sub * sub)
    tile = min(tile, vmem_cap_rows)

    # Keep >= ~8 grid steps when rows allow (hides pipeline prologue/epilogue).
    eight_step_tile = (rows // 8) // sub * sub
    if eight_step_tile >= sub:
        tile = min(tile, eight_step_tile)

    # Never bigger than the (sublane-rounded) row count.
    tile = max(sub, min(tile, _round_up(rows, sub)))

    # Prefer an even step count (balances the two v7x TensorCores; neutral on
    # the single-core v5e/v6e).
    steps = _cdiv(rows, tile)
    if steps > 1 and steps % 2 == 1:
        new_tile = max(sub, _round_up(_cdiv(rows, steps + 1), sub))
        if _cdiv(rows, new_tile) % 2 == 0:
            tile = new_tile

    return tile


def normalization(x, alpha, bias, *, eps=1e-6, tile_rows=None):
    """Pallas TPU forward for the PyTorch `Normalization` module.

    Best suited to hidden >= 128 (lane-dense output stores); smaller hidden is
    still correct but lowers to masked partial stores.  I/O stays in x.dtype
    (bf16 callers get halved HBM traffic); compute is f32 internally.
    """
    orig_shape = x.shape
    hidden = orig_shape[-1]
    x2d = x.reshape(-1, hidden)
    rows = x2d.shape[0]

    vmem_cap = _vmem_capacity_bytes()
    if tile_rows is None:
        tile_rows = _pick_tile_rows(rows, hidden, x.dtype, vmem_cap // 2)

    alpha2d = alpha.reshape(1, hidden)
    bias2d = bias.reshape(1, hidden)

    kernel = functools.partial(_norm_kernel, hidden=hidden, eps=eps)

    # No host-side pad/slice: pl.cdiv grid + Pallas partial-block handling keep
    # the op at exactly one HBM read and one HBM write of x.
    grid = (pl.cdiv(rows, tile_rows),)

    # Scoped-VMEM limit = actual double-buffered footprint + ~25% headroom
    # (floored at the 16 MiB default so Mosaic internal scratch always fits),
    # rather than 3/4 of physical VMEM, so surrounding XLA fusions keep room.
    itemsize = jnp.dtype(x.dtype).itemsize
    block_bytes = tile_rows * hidden * itemsize * 4        # 2x in + 2x out buffers
    param_bytes = 4 * hidden * jnp.dtype(alpha.dtype).itemsize  # alpha+bias, 2x buf
    vmem_limit = max(int((block_bytes + param_bytes) * 5 // 4) + (2 << 20), 16 << 20)
    vmem_limit = min(vmem_limit, int(vmem_cap * 3 // 4))

    out = pl.pallas_call(
        kernel,
        out_shape=jax.ShapeDtypeStruct((rows, hidden), x.dtype),
        grid_spec=pltpu.PrefetchScalarGridSpec(
            num_scalar_prefetch=0,
            grid=grid,
            in_specs=[
                pl.BlockSpec((tile_rows, hidden), lambda i: (i, 0)),
                pl.BlockSpec((1, hidden), lambda i: (0, 0)),
                pl.BlockSpec((1, hidden), lambda i: (0, 0)),
            ],
            out_specs=pl.BlockSpec((tile_rows, hidden), lambda i: (i, 0)),
        ),
        compiler_params=pltpu.CompilerParams(
            dimension_semantics=("parallel",),
            vmem_limit_bytes=vmem_limit,
        ),
    )(x2d, alpha2d, bias2d)

    return out.reshape(orig_shape)


if __name__ == "__main__":
    key = jax.random.PRNGKey(0)

    def ref_norm(x, alpha, bias, eps=1e-6):
        h = x.shape[-1]
        x = x.astype(jnp.float32)
        mean = jnp.mean(x, axis=-1, keepdims=True)
        std = jnp.sqrt(jnp.sum((x - mean) ** 2, axis=-1, keepdims=True) / (h - 1))
        return alpha.astype(jnp.float32) * (x - mean) / (std - eps) + bias.astype(jnp.float32)

    # hidden=128 exercises the lane-dense fast path; hidden=32 checks the
    # masked-store fallback; (4, 64, 256) exercises a multi-step (even) grid.
    for batch, seq, hidden in [(2, 8, 128), (2, 8, 32), (4, 64, 256)]:
        kx, ka, kb = jax.random.split(jax.random.fold_in(key, hidden), 3)
        x = jax.random.normal(kx, (batch, seq, hidden), dtype=jnp.float32)
        # Module inits alpha/bias to zeros; use small non-zero values so the
        # affine part is actually exercised.
        alpha = jax.random.normal(ka, (hidden,), dtype=jnp.float32) * 0.1 + 1.0
        bias = jax.random.normal(kb, (hidden,), dtype=jnp.float32) * 0.1

        out = normalization(x, alpha, bias)
        jax.block_until_ready(out)

        ref = ref_norm(x, alpha, bias)
        assert jnp.allclose(out, ref, atol=1e-5, rtol=1e-5), (
            f"mismatch vs reference at hidden={hidden}")

    # bf16 I/O smoke test (halved HBM traffic path; compute still f32 inside).
    kx, ka, kb = jax.random.split(jax.random.fold_in(key, 999), 3)
    xb = jax.random.normal(kx, (2, 8, 128), dtype=jnp.bfloat16)
    ab = (jax.random.normal(ka, (128,), dtype=jnp.float32) * 0.1 + 1.0).astype(jnp.bfloat16)
    bb = (jax.random.normal(kb, (128,), dtype=jnp.float32) * 0.1).astype(jnp.bfloat16)
    outb = normalization(xb, ab, bb)
    jax.block_until_ready(outb)
    refb = ref_norm(xb, ab, bb)
    assert jnp.allclose(outb.astype(jnp.float32), refb, atol=3e-2, rtol=3e-2), (
        "mismatch vs reference at bf16")

    print("KERNEL_OK")
</pallas_src>

<mosaic_0001>
module attributes {stable_mosaic.version = 11 : i64} {
  func.func @_norm_kernel(%arg0: i32, %arg1: memref<16x128xf32, #tpu.memory_space<vmem>>, %arg2: memref<1x128xf32, #tpu.memory_space<vmem>>, %arg3: memref<1x128xf32, #tpu.memory_space<vmem>>, %arg4: memref<16x128xf32, #tpu.memory_space<vmem>>) attributes {dimension_semantics = [#tpu.dimension_semantics<parallel>], iteration_bounds = array<i64: 1>, scalar_prefetch = 0 : i64, scratch_operands = 0 : i64, tpu.core_type = #tpu.core_type<tc>, window_params = [{transform_indices = @transform_0, window_bounds = array<i64: 16, 128>}, {pipeline_mode = #tpu.pipeline_mode<synchronous>, transform_indices = @transform_1, window_bounds = array<i64: 1, 128>}, {pipeline_mode = #tpu.pipeline_mode<synchronous>, transform_indices = @transform_2, window_bounds = array<i64: 1, 128>}, {transform_indices = @transform_3, window_bounds = array<i64: 16, 128>}]} {
    %c0 = arith.constant 0 : index
    %c0_0 = arith.constant 0 : index
    %0 = vector.load %arg1[%c0, %c0_0] : memref<16x128xf32, #tpu.memory_space<vmem>>, vector<16x128xf32>
    %cst = arith.constant dense<0.000000e+00> : vector<16xf32>
    %1 = vector.multi_reduction <add>, %0, %cst [1] : vector<16x128xf32> to vector<16xf32>
    %2 = vector.shape_cast %1 : vector<16xf32> to vector<16x1xf32>
    %cst_1 = arith.constant 1.280000e+02 : f32
    %3 = vector.broadcast %cst_1 : f32 to vector<16x1xf32>
    %4 = arith.divf %2, %3 : vector<16x1xf32>
    %5 = vector.broadcast %4 : vector<16x1xf32> to vector<16x128xf32>
    %6 = arith.subf %0, %5 : vector<16x128xf32>
    %7 = arith.mulf %6, %6 : vector<16x128xf32>
    %cst_2 = arith.constant dense<0.000000e+00> : vector<16xf32>
    %8 = vector.multi_reduction <add>, %7, %cst_2 [1] : vector<16x128xf32> to vector<16xf32>
    %9 = vector.shape_cast %8 : vector<16xf32> to vector<16x1xf32>
    %cst_3 = arith.constant 1.270000e+02 : f32
    %10 = vector.broadcast %cst_3 : f32 to vector<16x1xf32>
    %11 = arith.divf %9, %10 : vector<16x1xf32>
    %12 = math.sqrt %11 : vector<16x1xf32>
    %cst_4 = arith.constant 9.99999997E-7 : f32
    %13 = vector.broadcast %cst_4 : f32 to vector<16x1xf32>
    %14 = arith.subf %12, %13 : vector<16x1xf32>
    %15 = tpu.reciprocal %14 : vector<16x1xf32> -> vector<16x1xf32>
    %c0_5 = arith.constant 0 : index
    %c0_6 = arith.constant 0 : index
    %16 = vector.load %arg2[%c0_5, %c0_6] : memref<1x128xf32, #tpu.memory_space<vmem>>, vector<1x128xf32>
    %c0_7 = arith.constant 0 : index
    %c0_8 = arith.constant 0 : index
    %17 = vector.load %arg3[%c0_7, %c0_8] : memref<1x128xf32, #tpu.memory_space<vmem>>, vector<1x128xf32>
    %18 = vector.broadcast %16 : vector<1x128xf32> to vector<16x128xf32>
    %19 = arith.mulf %18, %6 : vector<16x128xf32>
    %20 = vector.broadcast %15 : vector<16x1xf32> to vector<16x128xf32>
    %21 = arith.mulf %19, %20 : vector<16x128xf32>
    %22 = vector.broadcast %17 : vector<1x128xf32> to vector<16x128xf32>
    %23 = arith.addf %21, %22 : vector<16x128xf32>
    %c0_9 = arith.constant 0 : index
    %c0_10 = arith.constant 0 : index
    %24 = vector.load %arg4[%c0_9, %c0_10] : memref<16x128xf32, #tpu.memory_space<vmem>>, vector<16x128xf32>
    tpu.vector_store %arg4[%c0_9, %c0_10], %23 {strides = array<i32>} : memref<16x128xf32, #tpu.memory_space<vmem>>, vector<16x128xf32>,
    return
  }
  func.func @transform_0(%arg0: i32) -> (i32, i32) {
    %c0_i32 = arith.constant 0 : i32
    %c0_i32_0 = arith.constant 0 : i32
    return %arg0, %c0_i32 : i32, i32
  }
  func.func @transform_1(%arg0: i32) -> (i32, i32) {
    %c0_i32 = arith.constant 0 : i32
    %c0_i32_0 = arith.constant 0 : i32
    %c0_i32_1 = arith.constant 0 : i32
    return %c0_i32, %c0_i32_0 : i32, i32
  }
  func.func @transform_2(%arg0: i32) -> (i32, i32) {
    %c0_i32 = arith.constant 0 : i32
    %c0_i32_0 = arith.constant 0 : i32
    %c0_i32_1 = arith.constant 0 : i32
    return %c0_i32, %c0_i32_0 : i32, i32
  }
  func.func @transform_3(%arg0: i32) -> (i32, i32) {
    %c0_i32 = arith.constant 0 : i32
    %c0_i32_0 = arith.constant 0 : i32
    return %arg0, %c0_i32 : i32, i32
  }
}

</mosaic_0001>

<llo_original>
// kernel: tpu_custom_call.1
$region0: #{tpu_custom_call.1}
  #allocation0 [shape = 'u32[]', space=smem, size = 0x4, offset = 0x4, fixed_abs, tag = 'smem constant byte address 0x4 - core index']
  #allocation1 [shape = 'u32[72,128]{1,0:T(1,128)}', space=vmem, size = 0x9000, scoped, tag = 'internal scratch']
  %s0 = inlined_call_operand.hbm [shape: f32[16,128], index: 0, kind: input, shape index: {}]
  %s1 = inlined_call_operand.hbm [shape: f32[1,128], index: 1, kind: input, shape index: {}]
  %s2 = inlined_call_operand.vmem [shape: f32[1,128], index: 2, kind: input, shape index: {}]
  %s3 = inlined_call_operand.hbm [shape: f32[16,128], index: 3, kind: output, shape index: {}]
  %s4 = sld [smem:[#allocation0]]
  $region30: #{tpu_custom_call.1} parent=0
    _
  %s6 = ssub.s32 1, %s4
  %s7 = scalar_select 0, %s6, %s4
  $region1: #{tpu_custom_call.1} parent=0
    #allocation2 [shape = 'u8[8192]{0}', space=vmem, size = 0x2000, scoped, tag = 'input window, operand 0, single buffered']
    #allocation3 [shape = 's32[1]{0}', space=sflag, size = 0x4, scoped, tag = 'scoped memory for tpu_custom_call.1']
    #allocation4 [shape = 's32[1]{0}', space=sflag, size = 0x4, scoped, tag = 'scoped memory for tpu_custom_call.1']
    #allocation5 [shape = 'u8[512]{0}', space=vmem, size = 0x400, scoped, tag = 'input window, operand 1, single buffered']
    #allocation6 [shape = 's32[1]{0}', space=sflag, size = 0x4, scoped, tag = 'scoped memory for tpu_custom_call.1']
    #allocation7 [shape = 'u8[8192]{0}', space=vmem, size = 0x2000, scoped, tag = 'output window, operand 0, single buffered']
    %8 = vsyncpa [#allocation3], 0
    %9 = vsyncpa [#allocation6], 0
    %10 = vsyncpa [#allocation4], 0
    // Predicated region
    $region2: #{tpu_custom_call.1} parent=1 // pred_check
      _
    $region3: #{tpu_custom_call.1} parent=1 // pred_check_branch
      %12 = sbr.rel (0) target = $region5
    $region4: #{tpu_custom_call.1} parent=1 // pred_region
      %14 = vsyncadd [#allocation3], 0
      %s15 = sshll.u32 %s0, 4
      %s16 = int_to_ptr.hbm [resolvable:$true] %s15
      %s17 = sshll.u32 [#allocation2], 4
      %s18 = int_to_ptr.vmem [resolvable:$true] %s17
      %23 = dma.hbm_to_vmem [thread:$0]  %s16, 256, %s18, [#allocation3], 128, 128, 8
    $region5: #{tpu_custom_call.1} parent=1 // pred_fallthru
      _
    // Predicated region
    $region6: #{tpu_custom_call.1} parent=1 // pred_check
      _
    $region7: #{tpu_custom_call.1} parent=1 // pred_check_branch
      %25 = sbr.rel (0) target = $region9
    $region8: #{tpu_custom_call.1} parent=1 // pred_region
      %27 = vsyncadd [#allocation6], 0
      %s29 = sshll.u32 %s1, 4
      %s30 = int_to_ptr.hbm [resolvable:$true] %s29
      %s31 = sshll.u32 [#allocation5], 4
      %s32 = int_to_ptr.vmem [resolvable:$true] %s31
      %34 = dma.hbm_to_vmem [thread:$0]  %s30, 16, %s32, [#allocation6]
    $region9: #{tpu_custom_call.1} parent=1 // pred_fallthru
      _
    // Predicated region
    $region10: #{tpu_custom_call.1} parent=1 // pred_check
      _
    $region11: #{tpu_custom_call.1} parent=1 // pred_check_branch
      %36 = sbr.rel (0) target = $region13
    $region12: #{tpu_custom_call.1} parent=1 // pred_region
      _
    $region13: #{tpu_custom_call.1} parent=1 // pred_fallthru
      _
    // Predicated region
    $region14: #{tpu_custom_call.1} parent=1 // pred_check
      _
    $region15: #{tpu_custom_call.1} parent=1 // pred_check_branch
      %38 = sbr.rel (0) target = $region17
    $region16: #{tpu_custom_call.1} parent=1 // pred_region
      %40 = dma.done [#allocation3], 256
    $region17: #{tpu_custom_call.1} parent=1 // pred_fallthru
      _
    // Predicated region
    $region18: #{tpu_custom_call.1} parent=1 // pred_check
      _
    $region19: #{tpu_custom_call.1} parent=1 // pred_check_branch
      %42 = sbr.rel (0) target = $region21
    $region20: #{tpu_custom_call.1} parent=1 // pred_region
      %44 = dma.done [#allocation6], 16
    $region21: #{tpu_custom_call.1} parent=1 // pred_fallthru
      _
    %v45 = vld [vmem:[#allocation2] sm:$0xff]
    %v46 = vld [vmem:[#allocation2 + $0x8] sm:$0xff]
    %47 = vadd.xlane.f32.xlu0 %v45
    %v48 = vpop.xlane.xlu0 %47
    %49 = vadd.xlane.f32.xlu0 %v46
    %v50 = vpop.xlane.xlu0 %49
    %v51 = vrcp.pop 128.0
    %v52 = vmul.f32 128.0, %v51
    %v53 = vsub.f32 1.0, %v52
    %v54 = vmul.f32 %v51, %v53
    %v55 = vadd.f32 %v51, %v54
    %vm56 = vweird.f32 %v51
    %v57 = vsel %vm56, %v51, %v55
    %v58 = vmul.f32 %v48, %v57
    %v59 = vmul.f32 %v50, %v57
    %v60 = vsub.f32 %v45, %v58
    %v61 = vsub.f32 %v46, %v59
    %v62 = vmul.f32 %v60, %v60
    %v63 = vmul.f32 %v61, %v61
    %64 = vadd.xlane.f32.xlu0 %v62
    %v65 = vpop.xlane.xlu0 %64
    %66 = vadd.xlane.f32.xlu0 %v63
    %v67 = vpop.xlane.xlu0 %66
    %v68 = vrcp.pop 127.0
    %v69 = vmul.f32 127.0, %v68
    %v70 = vsub.f32 1.0, %v69
    %v71 = vmul.f32 %v68, %v70
    %v72 = vadd.f32 %v68, %v71
    %vm73 = vweird.f32 %v68
    %v74 = vsel %vm73, %v68, %v72
    %v75 = vmul.f32 %v65, %v74
    %v76 = vmul.f32 %v67, %v74
    %v77 = vrsqrt.pop %v75
    %v78 = vmul.f32 %v77, %v75
    %v79 = vmul.f32 %v78, %v77
    %v80 = vmul.f32 0.5, %v79
    %v81 = vsub.f32 1.5, %v80
    %v82 = vmul.f32 %v77, %v81
    %v83 = vmul.f32 %v75, %v82
    %vm84 = vcmp.eq.f32.partialorder %v75, inf
    %v85 = vsel %vm84, %v75, %v83
    %vm86 = vcmp.eq.f32.partialorder %v75, 0.0
    %v87 = vand.u32 %v75, 2147483648
    %v88 = vsel %vm86, %v87, %v85
    %v89 = vrsqrt.pop %v76
    %v90 = vmul.f32 %v89, %v76
    %v91 = vmul.f32 %v90, %v89
    %v92 = vmul.f32 0.5, %v91
    %v93 = vsub.f32 1.5, %v92
    %v94 = vmul.f32 %v89, %v93
    %v95 = vmul.f32 %v76, %v94
    %vm96 = vcmp.eq.f32.partialorder %v76, inf
    %v97 = vsel %vm96, %v76, %v95
    %vm98 = vcmp.eq.f32.partialorder %v76, 0.0
    %v99 = vand.u32 %v76, 2147483648
    %v100 = vsel %vm98, %v99, %v97
    %v101 = vsub.f32 %v88, 1e-06
    %v102 = vsub.f32 %v100, 1e-06
    %v103 = vrcp.pop %v101
    %v104 = vmul.f32 %v101, %v103
    %v105 = vsub.f32 1.0, %v104
    %v106 = vmul.f32 %v103, %v105
    %v107 = vadd.f32 %v103, %v106
    %vm108 = vweird.f32 %v101
    %vm109 = vweird.f32 %v103
    %vm110 = vmor %vm108, %vm109
    %v111 = vsel %vm110, %v103, %v107
    %v112 = vand.u32 2147483647, %v101
    %vm113 = vcmp.eq.f32.partialorder %v112, 8.507059e+37
    %v114 = vand.u32 %v101, 2147483648
    %v115 = vor.u32 1.1754944e-38, %v114
    %v116 = vsel %vm113, %v115, %v111
    %v117 = vrcp.pop %v102
    %v118 = vmul.f32 %v102, %v117
    %v119 = vsub.f32 1.0, %v118
    %v120 = vmul.f32 %v117, %v119
    %v121 = vadd.f32 %v117, %v120
    %vm122 = vweird.f32 %v102
    %vm123 = vweird.f32 %v117
    %vm124 = vmor %vm122, %vm123
    %v125 = vsel %vm124, %v117, %v121
    %v126 = vand.u32 2147483647, %v102
    %vm127 = vcmp.eq.f32.partialorder %v126, 8.507059e+37
    %v128 = vand.u32 %v102, 2147483648
    %v129 = vor.u32 1.1754944e-38, %v128
    %v130 = vsel %vm127, %v129, %v125
    %v131 = vld [vmem:[#allocation5] sm:$0x1]
    %v132 = vld [vmem:[%s2] sm:$0x1]
    %v134 = vperm.slane %v131, 0
    %v136 = vmul.f32 %v134, %v60
    %v137 = vmul.f32 %v134, %v61
    %v138 = vmul.f32 %v136, %v116
    %v139 = vmul.f32 %v137, %v130
    %v141 = vperm.slane %v132, 0
    %v143 = vadd.f32 %v138, %v141
    %v144 = vadd.f32 %v139, %v141
    %145 = vst [vmem:[#allocation7] sm:$0xff] %v143
    %146 = vst [vmem:[#allocation7 + $0x8] sm:$0xff] %v144
    // Predicated region
    $region22: #{tpu_custom_call.1} parent=1 // pred_check
      _
    $region23: #{tpu_custom_call.1} parent=1 // pred_check_branch
      %148 = sbr.rel (0) target = $region25
    $region24: #{tpu_custom_call.1} parent=1 // pred_region
      %150 = vsyncadd [#allocation4], 0
      %s151 = sshll.u32 [#allocation7], 4
      %s152 = int_to_ptr.vmem [resolvable:$true] %s151
      %s153 = sshll.u32 %s3, 4
      %s154 = int_to_ptr.hbm [resolvable:$true] %s153
      %159 = dma.vmem_to_hbm [thread:$0]  %s152, 256, %s154, [#allocation4], 128, 128, 8
    $region25: #{tpu_custom_call.1} parent=1 // pred_fallthru
      _
    // Predicated region
    $region26: #{tpu_custom_call.1} parent=1 // pred_check
      _
    $region27: #{tpu_custom_call.1} parent=1 // pred_check_branch
      %161 = sbr.rel (0) target = $region29
    $region28: #{tpu_custom_call.1} parent=1 // pred_region
      %163 = dma.done [#allocation4], 256
    $region29: #{tpu_custom_call.1} parent=1 // pred_fallthru
      _
    %164 = vsyncpa [#allocation3], 1
    %165 = vsyncpa [#allocation6], 1
    %166 = vsyncpa [#allocation4], 1

</llo_original>
